<compile_context>
chip_gen: v7x
topology: tpu7x:2x2x1
jax: 0.10.0
libtpu: 0.0.40
codegen_flags: <defaults>
</compile_context>

<pallas_src>
import jax
import jax.numpy as jnp
import numpy as np
from jax.experimental import pallas as pl
from jax.experimental.pallas import tpu as pltpu

NEG = -1e30          # Python float literal (NOT a jnp array -> no captured consts)
SRC_CHUNK = 8        # sublane-aligned source-node chunk for the running neighbor max


def _pack_rows(arrays):
    """Pack same-lane-width 2-D arrays into one slab.

    Each segment starts at an 8-row (sublane) aligned offset so the in-kernel
    static slices are aligned views. Returns (slab, row_offsets)."""
    offs, rows = [], 0
    for a in arrays:
        offs.append(rows)
        rows += ((a.shape[0] + 7) // 8) * 8
    slab = jnp.zeros((rows, arrays[0].shape[1]), jnp.float32)
    for a, o in zip(arrays, offs):
        slab = slab.at[o:o + a.shape[0], :].set(a.astype(jnp.float32))
    return slab, tuple(offs)


def _make_kernel(n_pad, in_feats, hid_feats, mlp_feats,
                 offs_a, offs_b, offs_c, offs_d):
    o_wp1, o_bp1 = offs_a
    o_wc1, o_b1, o_wp2, o_bp2, o_wc2, o_b2 = offs_b
    o_wfc2, o_bfc2 = offs_c
    o_wfc3, o_bfc3 = offs_d
    n_chunks = n_pad // SRC_CHUNK

    def kernel(aidx_ref,                         # SMEM (1,) int32: action node id
               x_ref, adjt_ref, masks_ref,       # VMEM node data / graph
               pa_ref, pb_ref, pc_ref, pd_ref,   # VMEM packed parameter slabs
               out_ref,                          # (1, 1) output
               p_in_scr, p_hid_scr):             # VMEM scratch
        x = x_ref[...]                                       # (N, in)
        masks = masks_ref[...]                               # (N, 3)
        deg_mask = masks[:, 0:1]                             # in-degree > 0
        smask = masks[:, 1:2]                                # state membership
        vmask = masks[:, 2:3]                                # valid (non-pad) row

        def neigh_max(p_ref, feats):
            """Running max over 8-sublane source chunks; bounds live data to one
            (SRC_CHUNK, N, feats) slab instead of (N, N, feats)."""
            def body(c, acc):
                start = pl.multiple_of(c * SRC_CHUNK, SRC_CHUNK)
                a_chunk = adjt_ref[pl.ds(start, SRC_CHUNK), :]   # (CH, N) src x dst
                p_chunk = p_ref[pl.ds(start, SRC_CHUNK), :]      # (CH, feats)
                cand = jnp.where(a_chunk[:, :, None] > 0.0,
                                 p_chunk[:, None, :], NEG)       # (CH, N, feats)
                return jnp.maximum(acc, jnp.max(cand, axis=0))
            acc0 = jnp.full((n_pad, feats), NEG, jnp.float32)
            acc = jax.lax.fori_loop(0, n_chunks, body, acc0,
                                    unroll=n_chunks <= 8)
            return jnp.where(deg_mask > 0.0, acc, 0.0)   # DGL: zero-in-degree -> 0

        # ---- conv1 (SAGE 'pool') + relu, self/neigh matmuls fused ----
        wp1 = pa_ref[o_wp1:o_wp1 + in_feats, :]
        bp1 = pa_ref[o_bp1:o_bp1 + 1, :]
        p_in_scr[...] = jnp.maximum(
            jnp.dot(x, wp1, preferred_element_type=jnp.float32) + bp1, 0.0)
        n1 = neigh_max(p_in_scr, in_feats)
        wcat1 = pb_ref[o_wc1:o_wc1 + 2 * in_feats, :]
        b1 = pb_ref[o_b1:o_b1 + 1, :]
        h1 = jnp.dot(jnp.concatenate([x, n1], axis=1), wcat1,
                     preferred_element_type=jnp.float32) + b1
        h1 = jnp.maximum(h1, 0.0)
        # TODO(synk): nn.Dropout(0.1) is identity in eval mode; training-mode
        # stochastic dropout (pltpu.prng_*) intentionally not applied here.

        # ---- conv2 + relu ----
        wp2 = pb_ref[o_wp2:o_wp2 + hid_feats, :]
        bp2 = pb_ref[o_bp2:o_bp2 + 1, :]
        p_hid_scr[...] = jnp.maximum(
            jnp.dot(h1, wp2, preferred_element_type=jnp.float32) + bp2, 0.0)
        n2 = neigh_max(p_hid_scr, hid_feats)
        wcat2 = pb_ref[o_wc2:o_wc2 + 2 * hid_feats, :]
        b2 = pb_ref[o_b2:o_b2 + 1, :]
        h2 = jnp.dot(jnp.concatenate([h1, n2], axis=1), wcat2,
                     preferred_element_type=jnp.float32) + b2
        h2 = jnp.maximum(h2, 0.0)

        # ---- readout ----
        g_agg = jnp.max(jnp.where(vmask > 0.0, h2, NEG), axis=0, keepdims=True)
        s_agg = jnp.max(jnp.where(smask > 0.0, h2, NEG), axis=0, keepdims=True)
        p_hid_scr[...] = h2                                  # reuse scratch for gather
        a_vec = p_hid_scr[pl.ds(aidx_ref[0], 1), :]          # row gather, no matmul
        feat = jnp.concatenate([g_agg, s_agg, a_vec], axis=1)   # (1, 3*hid)

        # ---- MLP head (tiny; near-empty MXU tiles are accepted at this size) ----
        wfc2 = pc_ref[o_wfc2:o_wfc2 + 3 * hid_feats, :]
        bfc2 = pc_ref[o_bfc2:o_bfc2 + 1, :]
        hid = jnp.maximum(
            jnp.dot(feat, wfc2, preferred_element_type=jnp.float32) + bfc2, 0.0)
        wfc3 = pd_ref[o_wfc3:o_wfc3 + mlp_feats, :]
        bfc3 = pd_ref[o_bfc3:o_bfc3 + 1, :]
        out_ref[...] = (jnp.dot(hid, wfc3, preferred_element_type=jnp.float32)
                        + bfc3)

    return kernel


def graph_q_network(x, adj, states, actions, params):
    """x: (N, in) f32; adj: dense (dst, src) 0/1 f32; states: (S,) int32 node ids;
    actions: (1,) int32 node id; params: tuple from make_params."""
    (wp1, bp1, ws1, wn1, b1, wp2, bp2, ws2, wn2, b2,
     wfc2, bfc2, wfc3, bfc3) = params
    n, in_feats = x.shape
    hid_feats = ws1.shape[1]
    mlp_feats = wfc2.shape[1]
    n_pad = ((n + SRC_CHUNK - 1) // SRC_CHUNK) * SRC_CHUNK

    f32 = jnp.float32
    xp = jnp.zeros((n_pad, in_feats), f32).at[:n, :].set(x.astype(f32))
    adj_p = jnp.zeros((n_pad, n_pad), f32).at[:n, :n].set(adj.astype(f32))
    adj_t = adj_p.T                                  # (src, dst): src on sublanes
    # hoisted, layer-invariant masks: in-degree>0 | state membership | valid row
    deg_mask = (jnp.sum(adj_p, axis=1) > 0.0).astype(f32)
    smask = jnp.zeros((n_pad,), f32).at[states].set(1.0)
    vmask = jnp.zeros((n_pad,), f32).at[:n].set(1.0)
    masks = jnp.stack([deg_mask, smask, vmask], axis=1)          # (n_pad, 3)
    aidx = actions.astype(jnp.int32).reshape((1,))

    # fuse self/neigh weights and pack all params into 4 lane-homogeneous slabs
    wcat1 = jnp.concatenate([ws1, wn1], axis=0)                  # (2*in,  hid)
    wcat2 = jnp.concatenate([ws2, wn2], axis=0)                  # (2*hid, hid)
    slab_a, offs_a = _pack_rows([wp1, bp1])
    slab_b, offs_b = _pack_rows([wcat1, b1, wp2, bp2, wcat2, b2])
    slab_c, offs_c = _pack_rows([wfc2, bfc2])
    slab_d, offs_d = _pack_rows([wfc3, bfc3])

    kernel = _make_kernel(n_pad, in_feats, hid_feats, mlp_feats,
                          offs_a, offs_b, offs_c, offs_d)

    inputs = (aidx, xp, adj_t, masks, slab_a, slab_b, slab_c, slab_d)
    vmem = pl.BlockSpec(memory_space=pltpu.MemorySpace.VMEM)
    smem = pl.BlockSpec(memory_space=pltpu.MemorySpace.SMEM)

    in_bytes = sum(int(np.prod(a.shape)) * a.dtype.itemsize for a in inputs)
    scratch_bytes = 4 * n_pad * (in_feats + hid_feats)
    resident = in_bytes + scratch_bytes + 4
    vmem_limit = int(min(64 * 2**20, max(16 * 2**20, 8 * resident)))
    flops = (2 * n_pad * (in_feats * in_feats + 2 * in_feats * hid_feats
                          + hid_feats * hid_feats + 2 * hid_feats * hid_feats)
             + 2 * (3 * hid_feats * mlp_feats + mlp_feats))

    return pl.pallas_call(
        kernel,
        out_shape=jax.ShapeDtypeStruct((1, 1), jnp.float32),
        in_specs=[smem, vmem, vmem, vmem, vmem, vmem, vmem, vmem],
        out_specs=vmem,
        scratch_shapes=[pltpu.VMEM((n_pad, in_feats), jnp.float32),
                        pltpu.VMEM((n_pad, hid_feats), jnp.float32)],
        compiler_params=pltpu.CompilerParams(vmem_limit_bytes=vmem_limit),
        cost_estimate=pl.CostEstimate(flops=flops, transcendentals=0,
                                      bytes_accessed=in_bytes + 4),
    )(*inputs)
    # TODO(synk): for N >> 8 add a dst-node grid axis ("parallel") with tiled
    # BlockSpecs and cross-tile readout accumulators; not needed at toy size.


def reference(x, adj, states, actions, params):
    """Plain-JAX mirror of the PyTorch module semantics (eval mode)."""
    (wp1, bp1, ws1, wn1, b1, wp2, bp2, ws2, wn2, b2,
     wfc2, bfc2, wfc3, bfc3) = params

    def sage(xx, wp, bp, ws, wn, b):
        p = jnp.maximum(xx @ wp + bp, 0.0)
        masked = jnp.where(adj[:, :, None] > 0.0, p[None, :, :], NEG)
        neigh = jnp.max(masked, axis=1)
        deg = jnp.sum(adj, axis=1, keepdims=True)
        neigh = jnp.where(deg > 0.0, neigh, 0.0)
        return xx @ ws + neigh @ wn + b

    h = jnp.maximum(sage(x, wp1, bp1, ws1, wn1, b1), 0.0)
    h = jnp.maximum(sage(h, wp2, bp2, ws2, wn2, b2), 0.0)
    g_agg = jnp.max(h, axis=0, keepdims=True)
    s_agg = jnp.max(h[states], axis=0, keepdims=True)
    a_vec = h[actions]
    feat = jnp.concatenate([g_agg, s_agg, a_vec], axis=1)
    hid = jnp.maximum(feat @ wfc2 + bfc2, 0.0)
    return hid @ wfc3 + bfc3


def make_params(key, in_feats, hid_feats, hid_mlp, out_feats=1):
    ks = jax.random.split(key, 14)

    def w(k, shape, fan_in):
        return (jax.random.normal(k, shape, jnp.float32)
                / np.sqrt(fan_in)).astype(jnp.float32)

    # All linear weights stored pre-transposed: y = x @ W
    wp1 = w(ks[0], (in_feats, in_feats), in_feats)
    bp1 = w(ks[1], (1, in_feats), in_feats)
    ws1 = w(ks[2], (in_feats, hid_feats), in_feats)
    wn1 = w(ks[3], (in_feats, hid_feats), in_feats)
    b1 = jnp.zeros((1, hid_feats), jnp.float32)          # DGL SAGEConv bias init = 0
    wp2 = w(ks[4], (hid_feats, hid_feats), hid_feats)
    bp2 = w(ks[5], (1, hid_feats), hid_feats)
    ws2 = w(ks[6], (hid_feats, hid_feats), hid_feats)
    wn2 = w(ks[7], (hid_feats, hid_feats), hid_feats)
    b2 = jnp.zeros((1, hid_feats), jnp.float32)
    wfc2 = w(ks[8], (3 * hid_feats, hid_mlp), 3 * hid_feats)
    bfc2 = w(ks[9], (1, hid_mlp), 3 * hid_feats)
    wfc3 = w(ks[10], (hid_mlp, out_feats), hid_mlp)
    bfc3 = w(ks[11], (1, out_feats), hid_mlp)
    return (wp1, bp1, ws1, wn1, b1, wp2, bp2, ws2, wn2, b2, wfc2, bfc2, wfc3, bfc3)


if __name__ == "__main__":
    N, IN_FEATS, HID_FEATS, HID_MLP = 8, 16, 32, 64

    key = jax.random.PRNGKey(0)
    kx, kp = jax.random.split(key)

    # node features
    x = jax.random.normal(kx, (N, IN_FEATS), jnp.float32)

    # graph: directed ring + self-loops (every node has in-degree >= 1)
    adj_np = np.zeros((N, N), np.float32)
    for v in range(N):
        adj_np[v, v] = 1.0
        adj_np[v, (v - 1) % N] = 1.0
        adj_np[v, (v + 2) % N] = 1.0
    adj = jnp.asarray(adj_np)   # adj[dst, src]

    # states / actions (actions has exactly one element, as required by torch.cat)
    states = jnp.array([1, 3, 5], jnp.int32)
    actions = jnp.array([2], jnp.int32)

    params = make_params(kp, IN_FEATS, HID_FEATS, HID_MLP)

    out = graph_q_network(x, adj, states, actions, params)
    out = jax.block_until_ready(out)

    ref = reference(x, adj, states, actions, params)
    np.testing.assert_allclose(np.asarray(out), np.asarray(ref), rtol=1e-5, atol=1e-5)
    assert out.shape == (1, 1)

    print("KERNEL_OK")
</pallas_src>

<mosaic_0001>
module attributes {stable_mosaic.version = 11 : i64} {
  func.func @kernel(%arg0: memref<1xi32, #tpu.memory_space<smem>>, %arg1: memref<8x16xf32, #tpu.memory_space<vmem>>, %arg2: memref<8x8xf32, #tpu.memory_space<vmem>>, %arg3: memref<8x3xf32, #tpu.memory_space<vmem>>, %arg4: memref<24x16xf32, #tpu.memory_space<vmem>>, %arg5: memref<152x32xf32, #tpu.memory_space<vmem>>, %arg6: memref<104x64xf32, #tpu.memory_space<vmem>>, %arg7: memref<72x1xf32, #tpu.memory_space<vmem>>, %arg8: memref<1x1xf32, #tpu.memory_space<vmem>>, %arg9: memref<8x16xf32, #tpu.memory_space<vmem>>, %arg10: memref<8x32xf32, #tpu.memory_space<vmem>>) attributes {dimension_semantics = [], scalar_prefetch = 0 : i64, scratch_operands = 2 : i64, tpu.core_type = #tpu.core_type<tc>} {
    %c0 = arith.constant 0 : index
    %c0_0 = arith.constant 0 : index
    %0 = vector.load %arg1[%c0, %c0_0] : memref<8x16xf32, #tpu.memory_space<vmem>>, vector<8x16xf32>
    %c0_1 = arith.constant 0 : index
    %c0_2 = arith.constant 0 : index
    %1 = vector.load %arg3[%c0_1, %c0_2] : memref<8x3xf32, #tpu.memory_space<vmem>>, vector<8x3xf32>
    %2 = vector.extract_strided_slice %1 {offsets = [0, 0], sizes = [8, 1], strides = [1, 1]} : vector<8x3xf32> to vector<8x1xf32>
    %3 = vector.extract_strided_slice %1 {offsets = [0, 1], sizes = [8, 1], strides = [1, 1]} : vector<8x3xf32> to vector<8x1xf32>
    %4 = vector.extract_strided_slice %1 {offsets = [0, 2], sizes = [8, 1], strides = [1, 1]} : vector<8x3xf32> to vector<8x1xf32>
    %c0_3 = arith.constant 0 : index
    %c0_4 = arith.constant 0 : index
    %5 = vector.load %arg4[%c0_3, %c0_4] : memref<24x16xf32, #tpu.memory_space<vmem>>, vector<16x16xf32>
    %c16 = arith.constant 16 : index
    %c0_5 = arith.constant 0 : index
    %6 = vector.load %arg4[%c16, %c0_5] : memref<24x16xf32, #tpu.memory_space<vmem>>, vector<1x16xf32>
    %cst = arith.constant dense<0.000000e+00> : vector<8x16xf32>
    %7 = tpu.matmul %0, %5, %cst {dimension_numbers = #tpu.dot_dimension_numbers<[1], [0], [0], [1], [0, 0, 1, 1], [], []>} : vector<8x16xf32>, vector<16x16xf32>, vector<8x16xf32> -> vector<8x16xf32>
    %8 = vector.broadcast %6 : vector<1x16xf32> to vector<8x16xf32>
    %9 = arith.addf %7, %8 : vector<8x16xf32>
    %cst_6 = arith.constant 0.000000e+00 : f32
    %10 = vector.broadcast %cst_6 : f32 to vector<8x16xf32>
    %11 = arith.maximumf %9, %10 : vector<8x16xf32>
    %c0_7 = arith.constant 0 : index
    %c0_8 = arith.constant 0 : index
    %12 = vector.load %arg9[%c0_7, %c0_8] : memref<8x16xf32, #tpu.memory_space<vmem>>, vector<8x16xf32>
    tpu.vector_store %arg9[%c0_7, %c0_8], %11 {strides = array<i32>} : memref<8x16xf32, #tpu.memory_space<vmem>>, vector<8x16xf32>,
    %cst_9 = arith.constant -1.000000e+30 : f32
    %13 = vector.broadcast %cst_9 : f32 to vector<8x16xf32>
    %c0_i32 = arith.constant 0 : i32
    %c8_i32 = arith.constant 8 : i32
    %14 = arith.muli %c0_i32, %c8_i32 : i32
    %15 = tpu.assume_multiple %14, 8 : i32
    %16 = arith.index_cast %15 : i32 to index
    %c0_10 = arith.constant 0 : index
    %17 = vector.load %arg2[%16, %c0_10] : memref<8x8xf32, #tpu.memory_space<vmem>>, vector<8x8xf32>
    %18 = arith.index_cast %15 : i32 to index
    %c0_11 = arith.constant 0 : index
    %19 = vector.load %arg9[%18, %c0_11] : memref<8x16xf32, #tpu.memory_space<vmem>>, vector<8x16xf32>
    %20 = vector.shape_cast %17 : vector<8x8xf32> to vector<8x8x1xf32>
    %cst_12 = arith.constant 0.000000e+00 : f32
    %21 = vector.broadcast %cst_12 : f32 to vector<8x8x1xf32>
    %22 = arith.cmpf ogt, %20, %21 : vector<8x8x1xf32>
    %23 = vector.shape_cast %19 : vector<8x16xf32> to vector<8x1x16xf32>
    %cst_13 = arith.constant -1.000000e+30 : f32
    %24 = vector.shape_cast %22 : vector<8x8x1xi1> to vector<8x8x1xi1>
    %25 = vector.broadcast %24 : vector<8x8x1xi1> to vector<8x8x16xi1>
    %26 = vector.shape_cast %23 : vector<8x1x16xf32> to vector<8x1x16xf32>
    %27 = vector.broadcast %26 : vector<8x1x16xf32> to vector<8x8x16xf32>
    %28 = vector.broadcast %cst_13 : f32 to vector<8x8x16xf32>
    %29 = arith.select %25, %27, %28 : vector<8x8x16xi1>, vector<8x8x16xf32>
    %cst_14 = arith.constant dense<0xFF800000> : vector<8x16xf32>
    %30 = vector.multi_reduction <maximumf>, %29, %cst_14 [0] : vector<8x8x16xf32> to vector<8x16xf32>
    %31 = arith.maximumf %13, %30 : vector<8x16xf32>
    %c1_i32 = arith.constant 1 : i32
    %cst_15 = arith.constant 0.000000e+00 : f32
    %32 = vector.broadcast %cst_15 : f32 to vector<8x1xf32>
    %33 = arith.cmpf ogt, %2, %32 : vector<8x1xf32>
    %cst_16 = arith.constant 0.000000e+00 : f32
    %34 = vector.shape_cast %33 : vector<8x1xi1> to vector<8x1xi1>
    %35 = vector.broadcast %34 : vector<8x1xi1> to vector<8x16xi1>
    %36 = vector.broadcast %cst_16 : f32 to vector<8x16xf32>
    %37 = arith.select %35, %31, %36 : vector<8x16xi1>, vector<8x16xf32>
    %c0_17 = arith.constant 0 : index
    %c0_18 = arith.constant 0 : index
    %38 = vector.load %arg5[%c0_17, %c0_18] : memref<152x32xf32, #tpu.memory_space<vmem>>, vector<32x32xf32>
    %c32 = arith.constant 32 : index
    %c0_19 = arith.constant 0 : index
    %39 = vector.load %arg5[%c32, %c0_19] : memref<152x32xf32, #tpu.memory_space<vmem>>, vector<1x32xf32>
    %40 = tpu.concatenate %0, %37 in 1 : vector<8x16xf32>, vector<8x16xf32> -> vector<8x32xf32>
    %cst_20 = arith.constant dense<0.000000e+00> : vector<8x32xf32>
    %41 = tpu.matmul %40, %38, %cst_20 {dimension_numbers = #tpu.dot_dimension_numbers<[1], [0], [0], [1], [0, 0, 1, 1], [], []>} : vector<8x32xf32>, vector<32x32xf32>, vector<8x32xf32> -> vector<8x32xf32>
    %42 = vector.broadcast %39 : vector<1x32xf32> to vector<8x32xf32>
    %43 = arith.addf %41, %42 : vector<8x32xf32>
    %cst_21 = arith.constant 0.000000e+00 : f32
    %44 = vector.broadcast %cst_21 : f32 to vector<8x32xf32>
    %45 = arith.maximumf %43, %44 : vector<8x32xf32>
    %c40 = arith.constant 40 : index
    %c0_22 = arith.constant 0 : index
    %46 = vector.load %arg5[%c40, %c0_22] : memref<152x32xf32, #tpu.memory_space<vmem>>, vector<32x32xf32>
    %c72 = arith.constant 72 : index
    %c0_23 = arith.constant 0 : index
    %47 = vector.load %arg5[%c72, %c0_23] : memref<152x32xf32, #tpu.memory_space<vmem>>, vector<1x32xf32>
    %cst_24 = arith.constant dense<0.000000e+00> : vector<8x32xf32>
    %48 = tpu.matmul %45, %46, %cst_24 {dimension_numbers = #tpu.dot_dimension_numbers<[1], [0], [0], [1], [0, 0, 1, 1], [], []>} : vector<8x32xf32>, vector<32x32xf32>, vector<8x32xf32> -> vector<8x32xf32>
    %49 = vector.broadcast %47 : vector<1x32xf32> to vector<8x32xf32>
    %50 = arith.addf %48, %49 : vector<8x32xf32>
    %cst_25 = arith.constant 0.000000e+00 : f32
    %51 = vector.broadcast %cst_25 : f32 to vector<8x32xf32>
    %52 = arith.maximumf %50, %51 : vector<8x32xf32>
    %c0_26 = arith.constant 0 : index
    %c0_27 = arith.constant 0 : index
    %53 = vector.load %arg10[%c0_26, %c0_27] : memref<8x32xf32, #tpu.memory_space<vmem>>, vector<8x32xf32>
    tpu.vector_store %arg10[%c0_26, %c0_27], %52 {strides = array<i32>} : memref<8x32xf32, #tpu.memory_space<vmem>>, vector<8x32xf32>,
    %cst_28 = arith.constant -1.000000e+30 : f32
    %54 = vector.broadcast %cst_28 : f32 to vector<8x32xf32>
    %c0_i32_29 = arith.constant 0 : i32
    %c8_i32_30 = arith.constant 8 : i32
    %55 = arith.muli %c0_i32_29, %c8_i32_30 : i32
    %56 = tpu.assume_multiple %55, 8 : i32
    %57 = arith.index_cast %56 : i32 to index
    %c0_31 = arith.constant 0 : index
    %58 = vector.load %arg2[%57, %c0_31] : memref<8x8xf32, #tpu.memory_space<vmem>>, vector<8x8xf32>
    %59 = arith.index_cast %56 : i32 to index
    %c0_32 = arith.constant 0 : index
    %60 = vector.load %arg10[%59, %c0_32] : memref<8x32xf32, #tpu.memory_space<vmem>>, vector<8x32xf32>
    %61 = vector.shape_cast %58 : vector<8x8xf32> to vector<8x8x1xf32>
    %cst_33 = arith.constant 0.000000e+00 : f32
    %62 = vector.broadcast %cst_33 : f32 to vector<8x8x1xf32>
    %63 = arith.cmpf ogt, %61, %62 : vector<8x8x1xf32>
    %64 = vector.shape_cast %60 : vector<8x32xf32> to vector<8x1x32xf32>
    %cst_34 = arith.constant -1.000000e+30 : f32
    %65 = vector.shape_cast %63 : vector<8x8x1xi1> to vector<8x8x1xi1>
    %66 = vector.broadcast %65 : vector<8x8x1xi1> to vector<8x8x32xi1>
    %67 = vector.shape_cast %64 : vector<8x1x32xf32> to vector<8x1x32xf32>
    %68 = vector.broadcast %67 : vector<8x1x32xf32> to vector<8x8x32xf32>
    %69 = vector.broadcast %cst_34 : f32 to vector<8x8x32xf32>
    %70 = arith.select %66, %68, %69 : vector<8x8x32xi1>, vector<8x8x32xf32>
    %cst_35 = arith.constant dense<0xFF800000> : vector<8x32xf32>
    %71 = vector.multi_reduction <maximumf>, %70, %cst_35 [0] : vector<8x8x32xf32> to vector<8x32xf32>
    %72 = arith.maximumf %54, %71 : vector<8x32xf32>
    %c1_i32_36 = arith.constant 1 : i32
    %cst_37 = arith.constant 0.000000e+00 : f32
    %73 = vector.broadcast %cst_37 : f32 to vector<8x1xf32>
    %74 = arith.cmpf ogt, %2, %73 : vector<8x1xf32>
    %cst_38 = arith.constant 0.000000e+00 : f32
    %75 = vector.shape_cast %74 : vector<8x1xi1> to vector<8x1xi1>
    %76 = vector.broadcast %75 : vector<8x1xi1> to vector<8x32xi1>
    %77 = vector.broadcast %cst_38 : f32 to vector<8x32xf32>
    %78 = arith.select %76, %72, %77 : vector<8x32xi1>, vector<8x32xf32>
    %c80 = arith.constant 80 : index
    %c0_39 = arith.constant 0 : index
    %79 = vector.load %arg5[%c80, %c0_39] : memref<152x32xf32, #tpu.memory_space<vmem>>, vector<64x32xf32>
    %c144 = arith.constant 144 : index
    %c0_40 = arith.constant 0 : index
    %80 = vector.load %arg5[%c144, %c0_40] : memref<152x32xf32, #tpu.memory_space<vmem>>, vector<1x32xf32>
    %81 = tpu.concatenate %45, %78 in 1 : vector<8x32xf32>, vector<8x32xf32> -> vector<8x64xf32>
    %cst_41 = arith.constant dense<0.000000e+00> : vector<8x32xf32>
    %82 = tpu.matmul %81, %79, %cst_41 {dimension_numbers = #tpu.dot_dimension_numbers<[1], [0], [0], [1], [0, 0, 1, 1], [], []>} : vector<8x64xf32>, vector<64x32xf32>, vector<8x32xf32> -> vector<8x32xf32>
    %83 = vector.broadcast %80 : vector<1x32xf32> to vector<8x32xf32>
    %84 = arith.addf %82, %83 : vector<8x32xf32>
    %cst_42 = arith.constant 0.000000e+00 : f32
    %85 = vector.broadcast %cst_42 : f32 to vector<8x32xf32>
    %86 = arith.maximumf %84, %85 : vector<8x32xf32>
    %cst_43 = arith.constant 0.000000e+00 : f32
    %87 = vector.broadcast %cst_43 : f32 to vector<8x1xf32>
    %88 = arith.cmpf ogt, %4, %87 : vector<8x1xf32>
    %cst_44 = arith.constant -1.000000e+30 : f32
    %89 = vector.shape_cast %88 : vector<8x1xi1> to vector<8x1xi1>
    %90 = vector.broadcast %89 : vector<8x1xi1> to vector<8x32xi1>
    %91 = vector.broadcast %cst_44 : f32 to vector<8x32xf32>
    %92 = arith.select %90, %86, %91 : vector<8x32xi1>, vector<8x32xf32>
    %cst_45 = arith.constant dense<0xFF800000> : vector<32xf32>
    %93 = vector.multi_reduction <maximumf>, %92, %cst_45 [0] : vector<8x32xf32> to vector<32xf32>
    %94 = vector.shape_cast %93 : vector<32xf32> to vector<1x32xf32>
    %cst_46 = arith.constant 0.000000e+00 : f32
    %95 = vector.broadcast %cst_46 : f32 to vector<8x1xf32>
    %96 = arith.cmpf ogt, %3, %95 : vector<8x1xf32>
    %cst_47 = arith.constant -1.000000e+30 : f32
    %97 = vector.shape_cast %96 : vector<8x1xi1> to vector<8x1xi1>
    %98 = vector.broadcast %97 : vector<8x1xi1> to vector<8x32xi1>
    %99 = vector.broadcast %cst_47 : f32 to vector<8x32xf32>
    %100 = arith.select %98, %86, %99 : vector<8x32xi1>, vector<8x32xf32>
    %cst_48 = arith.constant dense<0xFF800000> : vector<32xf32>
    %101 = vector.multi_reduction <maximumf>, %100, %cst_48 [0] : vector<8x32xf32> to vector<32xf32>
    %102 = vector.shape_cast %101 : vector<32xf32> to vector<1x32xf32>
    %c0_49 = arith.constant 0 : index
    %c0_50 = arith.constant 0 : index
    %103 = vector.load %arg10[%c0_49, %c0_50] : memref<8x32xf32, #tpu.memory_space<vmem>>, vector<8x32xf32>
    tpu.vector_store %arg10[%c0_49, %c0_50], %86 {strides = array<i32>} : memref<8x32xf32, #tpu.memory_space<vmem>>, vector<8x32xf32>,
    %c0_51 = arith.constant 0 : index
    %104 = memref.load %arg0[%c0_51] : memref<1xi32, #tpu.memory_space<smem>>
    %105 = arith.index_cast %104 : i32 to index
    %c0_52 = arith.constant 0 : index
    %106 = vector.load %arg10[%105, %c0_52] : memref<8x32xf32, #tpu.memory_space<vmem>>, vector<1x32xf32>
    %107 = tpu.concatenate %94, %102, %106 in 1 : vector<1x32xf32>, vector<1x32xf32>, vector<1x32xf32> -> vector<1x96xf32>
    %c0_53 = arith.constant 0 : index
    %c0_54 = arith.constant 0 : index
    %108 = vector.load %arg6[%c0_53, %c0_54] : memref<104x64xf32, #tpu.memory_space<vmem>>, vector<96x64xf32>
    %c96 = arith.constant 96 : index
    %c0_55 = arith.constant 0 : index
    %109 = vector.load %arg6[%c96, %c0_55] : memref<104x64xf32, #tpu.memory_space<vmem>>, vector<1x64xf32>
    %cst_56 = arith.constant dense<0.000000e+00> : vector<1x64xf32>
    %110 = tpu.matmul %107, %108, %cst_56 {dimension_numbers = #tpu.dot_dimension_numbers<[1], [0], [0], [1], [0, 0, 1, 1], [], []>} : vector<1x96xf32>, vector<96x64xf32>, vector<1x64xf32> -> vector<1x64xf32>
    %111 = arith.addf %110, %109 : vector<1x64xf32>
    %cst_57 = arith.constant 0.000000e+00 : f32
    %112 = vector.broadcast %cst_57 : f32 to vector<1x64xf32>
    %113 = arith.maximumf %111, %112 : vector<1x64xf32>
    %c0_58 = arith.constant 0 : index
    %c0_59 = arith.constant 0 : index
    %114 = vector.load %arg7[%c0_58, %c0_59] : memref<72x1xf32, #tpu.memory_space<vmem>>, vector<64x1xf32>
    %c64 = arith.constant 64 : index
    %c0_60 = arith.constant 0 : index
    %115 = vector.load %arg7[%c64, %c0_60] : memref<72x1xf32, #tpu.memory_space<vmem>>, vector<1x1xf32>
    %cst_61 = arith.constant dense<0.000000e+00> : vector<1x1xf32>
    %116 = tpu.matmul %113, %114, %cst_61 {dimension_numbers = #tpu.dot_dimension_numbers<[1], [0], [0], [1], [0, 0, 1, 1], [], []>} : vector<1x64xf32>, vector<64x1xf32>, vector<1x1xf32> -> vector<1x1xf32>
    %117 = arith.addf %116, %115 : vector<1x1xf32>
    %c0_62 = arith.constant 0 : index
    %c0_63 = arith.constant 0 : index
    %118 = vector.load %arg8[%c0_62, %c0_63] : memref<1x1xf32, #tpu.memory_space<vmem>>, vector<1x1xf32>
    tpu.vector_store %arg8[%c0_62, %c0_63], %117 {strides = array<i32>} : memref<1x1xf32, #tpu.memory_space<vmem>>, vector<1x1xf32>,
    return
  }
}

</mosaic_0001>

<llo_original>
// kernel: tpu_custom_call.1
$region0: #{tpu_custom_call.1}
  #allocation0 [shape = 'u32[]', space=smem, size = 0x4, offset = 0x4, fixed_abs, tag = 'smem constant byte address 0x4 - core index']
  #allocation1 [shape = 'u32[144,128]{1,0:T(1,128)}', space=vmem, size = 0x12000, scoped, tag = 'internal scratch']
  #allocation2 [shape = 'f32[8,16]{1,0:T(8,128)}', space=vmem, size = 0x1000, scoped, tag = 'scratch operand']
  #allocation3 [shape = 'f32[8,32]{1,0:T(8,128)}', space=vmem, size = 0x1000, scoped, tag = 'scratch operand']
  #allocation4 [shape = 's32[1]{0:T(128)S(6)}', space=smem, size = 0x200, scoped, tag = 'scoped memory for tpu_custom_call.1']
  %s0 = inlined_call_operand.<no memory space> [shape: s32[1], index: 0, kind: input, shape index: {}]
  %s1 = inlined_call_operand.vmem [shape: f32[8,16], index: 1, kind: input, shape index: {}]
  %s2 = inlined_call_operand.vmem [shape: f32[8,8], index: 2, kind: input, shape index: {}]
  %s3 = inlined_call_operand.vmem [shape: f32[8,3], index: 3, kind: input, shape index: {}]
  %s4 = inlined_call_operand.vmem [shape: f32[24,16], index: 4, kind: input, shape index: {}]
  %s5 = inlined_call_operand.vmem [shape: f32[152,32], index: 5, kind: input, shape index: {}]
  %s6 = inlined_call_operand.vmem [shape: f32[104,64], index: 6, kind: input, shape index: {}]
  %s7 = inlined_call_operand.vmem [shape: f32[72,1], index: 7, kind: input, shape index: {}]
  %s8 = inlined_call_operand.hbm [shape: f32[1,1], index: 8, kind: output, shape index: {}]
  %s9 = sld [smem:[#allocation0]]
  $region42: #{tpu_custom_call.1} parent=0
    _
  %s11 = ssub.s32 1, %s9
  %s12 = scalar_select 0, %s11, %s9
  %13 = sst [smem:[#allocation4]] %s0
  $region1: #{tpu_custom_call.1} parent=0
    #allocation5 [shape = 'u8[512]{0}', space=vmem, size = 0x400, scoped, tag = 'output window, operand 0, single buffered']
    #allocation6 [shape = 's32[1]{0}', space=sflag, size = 0x4, scoped, tag = 'scoped memory for tpu_custom_call.1']
    %14 = vsyncpa [#allocation6], 0
    // Predicated region
    $region2: #{tpu_custom_call.1} parent=1 // pred_check
      _
    $region3: #{tpu_custom_call.1} parent=1 // pred_check_branch
      %16 = sbr.rel (0) target = $region5
    $region4: #{tpu_custom_call.1} parent=1 // pred_region
      _
    $region5: #{tpu_custom_call.1} parent=1 // pred_fallthru
      _
    // Predicated region
    $region6: #{tpu_custom_call.1} parent=1 // pred_check
      _
    $region7: #{tpu_custom_call.1} parent=1 // pred_check_branch
      %18 = sbr.rel (0) target = $region9
    $region8: #{tpu_custom_call.1} parent=1 // pred_region
      _
    $region9: #{tpu_custom_call.1} parent=1 // pred_fallthru
      _
    // Predicated region
    $region10: #{tpu_custom_call.1} parent=1 // pred_check
      _
    $region11: #{tpu_custom_call.1} parent=1 // pred_check_branch
      %20 = sbr.rel (0) target = $region13
    $region12: #{tpu_custom_call.1} parent=1 // pred_region
      _
    $region13: #{tpu_custom_call.1} parent=1 // pred_fallthru
      _
    // Predicated region
    $region14: #{tpu_custom_call.1} parent=1 // pred_check
      _
    $region15: #{tpu_custom_call.1} parent=1 // pred_check_branch
      %22 = sbr.rel (0) target = $region17
    $region16: #{tpu_custom_call.1} parent=1 // pred_region
      _
    $region17: #{tpu_custom_call.1} parent=1 // pred_fallthru
      _
    // Predicated region
    $region18: #{tpu_custom_call.1} parent=1 // pred_check
      _
    $region19: #{tpu_custom_call.1} parent=1 // pred_check_branch
      %24 = sbr.rel (0) target = $region21
    $region20: #{tpu_custom_call.1} parent=1 // pred_region
      _
    $region21: #{tpu_custom_call.1} parent=1 // pred_fallthru
      _
    // Predicated region
    $region22: #{tpu_custom_call.1} parent=1 // pred_check
      _
    $region23: #{tpu_custom_call.1} parent=1 // pred_check_branch
      %26 = sbr.rel (0) target = $region25
    $region24: #{tpu_custom_call.1} parent=1 // pred_region
      _
    $region25: #{tpu_custom_call.1} parent=1 // pred_fallthru
      _
    // Predicated region
    $region26: #{tpu_custom_call.1} parent=1 // pred_check
      _
    $region27: #{tpu_custom_call.1} parent=1 // pred_check_branch
      %28 = sbr.rel (0) target = $region29
    $region28: #{tpu_custom_call.1} parent=1 // pred_region
      _
    $region29: #{tpu_custom_call.1} parent=1 // pred_fallthru
      _
    // Predicated region
    $region30: #{tpu_custom_call.1} parent=1 // pred_check
      _
    $region31: #{tpu_custom_call.1} parent=1 // pred_check_branch
      %30 = sbr.rel (0) target = $region33
    $region32: #{tpu_custom_call.1} parent=1 // pred_region
      _
    $region33: #{tpu_custom_call.1} parent=1 // pred_fallthru
      _
    %v31 = vld [vmem:[%s1] sm:$0xff]
    %v32 = vld [vmem:[%s3] sm:$0xff]
    %v33 = vld [vmem:[%s4] sm:$0xff]
    %v34 = vld [vmem:[%s4 + $0x8] sm:$0xff]
    %v35 = vld [vmem:[%s4 + $0x10] sm:$0x1]
    %v36 = vlaneseq
    %v37 = vshrl.u32 %v36, 7
    %v38 = vsub.s32 0, %v37
    %v39 = vrot.slane %v35, %v38
    %vm40 = vcmask 130048
    %v42 = vsel %vm40, %v31, 0
    %44 = vmatprep.subr.mxu0 0.0
    %45 = vmatpush1.msra.mxu0 %v33
    %46 = vmatprep.subr.mxu0 0.0
    %47 = vmatpush1.msra.mxu0 %v34
    %48 = vmatprep.subr.mxu0 0.0
    %49 = vmatpush1.msra.mxu0 0.0
    %50 = vmatprep.subr.mxu0 0.0
    %51 = vmatpush1.msra.mxu0 0.0
    %52 = vmatprep.subr.mxu0 0.0
    %53 = vmatpush1.msra.mxu0 0.0
    %54 = vmatprep.subr.mxu0 0.0
    %55 = vmatpush1.msra.mxu0 0.0
    %56 = vmatprep.subr.mxu0 0.0
    %57 = vmatpush1.msra.mxu0 0.0
    %58 = vmatprep.subr.mxu0 0.0
    %59 = vmatpush1.msra.mxu0 0.0
    %60 = vmatprep.subr.mxu0 0.0
    %61 = vmatpush1.msra.mxu0 0.0
    %62 = vmatprep.subr.mxu0 0.0
    %63 = vmatpush1.msra.mxu0 0.0
    %64 = vmatprep.subr.mxu0 0.0
    %65 = vmatpush1.msra.mxu0 0.0
    %66 = vmatprep.subr.mxu0 0.0
    %67 = vmatpush1.msra.mxu0 0.0
    %68 = vmatprep.subr.mxu0 0.0
    %69 = vmatpush1.msra.mxu0 0.0
    %70 = vmatprep.subr.mxu0 0.0
    %71 = vmatpush1.msra.mxu0 0.0
    %72 = vmatprep.subr.mxu0 0.0
    %73 = vmatpush1.msra.mxu0 0.0
    %74 = vmatprep.subr.mxu0 0.0
    %75 = vmatpush1.msra.mxu0 0.0
    %76 = vmatprep.subr.mxu0 0.0
    %77 = vmatpush1.msra.mxu0 0.0
    %78 = vmatprep.subr.mxu0 0.0
    %79 = vmatpush1.msra.mxu0 0.0
    %80 = vmatprep.subr.mxu0 0.0
    %81 = vmatpush1.msra.mxu0 0.0
    %82 = vmatprep.subr.mxu0 0.0
    %83 = vmatpush1.msra.mxu0 0.0
    %84 = vmatprep.subr.mxu0 0.0
    %85 = vmatpush1.msra.mxu0 0.0
    %86 = vmatprep.subr.mxu0 0.0
    %87 = vmatpush1.msra.mxu0 0.0
    %88 = vmatprep.subr.mxu0 0.0
    %89 = vmatpush1.msra.mxu0 0.0
    %90 = vmatprep.subr.mxu0 0.0
    %91 = vmatpush1.msra.mxu0 0.0
    %92 = vmatprep.subr.mxu0 0.0
    %93 = vmatpush1.msra.mxu0 0.0
    %94 = vmatprep.subr.mxu0 0.0
    %95 = vmatpush1.msra.mxu0 0.0
    %96 = vmatprep.subr.mxu0 0.0
    %97 = vmatpush1.msra.mxu0 0.0
    %98 = vmatprep.subr.mxu0 0.0
    %99 = vmatpush1.msra.mxu0 0.0
    %100 = vmatprep.subr.mxu0 0.0
    %101 = vmatpush1.msra.mxu0 0.0
    %102 = vmatprep.subr.mxu0 0.0
    %103 = vmatpush1.msra.mxu0 0.0
    %104 = vmatprep.subr.mxu0 0.0
    %105 = vmatpush1.msra.mxu0 0.0
    %106 = vmatprep.subr.mxu0 0.0
    %107 = vmatpush1.msra.mxu0 0.0
    %108 = vmatprep.mubr.f32.mxu0 0.0
    %109 = vmatmul.mubr.f32.gmra.mrb[0].mxu0 %v42
    %v110 = vpop.f32.mrb[0].mxu0
    %v111 = vadd.f32 %v39, %v110
    %v112 = vpop.f32.mrb[0].mxu0
    %113 = vdwg.mxu0
    %v114 = vmax.f32 %v111, 0.0
    %115 = vst.msk [vmem:[#allocation2] sm:$0xff] %vm40, %v114
    %v116 = vld [vmem:[%s2] sm:$0xff]
    %v117 = vld [vmem:[#allocation2] sm:$0xff]
    %v118 = vlaneseq
    %v119 = vshrl.u32 %v118, 7
    %v120 = vsub.s32 0, %v119
    %v121 = vrot.slane %v116, %v120
    %123 = vbcast.lane.b32.xlu0 %v121, 256
    %v124 = vpop.permute.xlu0 %123
    %v125 = vlaneseq
    %v126 = vshrl.u32 %v125, 7
    %v127 = vsub.s32 1, %v126
    %v128 = vrot.slane %v116, %v127
    %130 = vbcast.lane.b32.xlu0 %v128, 256
    %v131 = vpop.permute.xlu0 %130
    %v132 = vlaneseq
    %v133 = vshrl.u32 %v132, 7
    %v134 = vsub.s32 2, %v133
    %v135 = vrot.slane %v116, %v134
    %137 = vbcast.lane.b32.xlu0 %v135, 256
    %v138 = vpop.permute.xlu0 %137
    %v139 = vlaneseq
    %v140 = vshrl.u32 %v139, 7
    %v141 = vsub.s32 3, %v140
    %v142 = vrot.slane %v116, %v141
    %144 = vbcast.lane.b32.xlu0 %v142, 256
    %v145 = vpop.permute.xlu0 %144
    %v146 = vlaneseq
    %v147 = vshrl.u32 %v146, 7
    %v148 = vsub.s32 4, %v147
    %v149 = vrot.slane %v116, %v148
    %151 = vbcast.lane.b32.xlu0 %v149, 256
    %v152 = vpop.permute.xlu0 %151
    %v153 = vlaneseq
    %v154 = vshrl.u32 %v153, 7
    %v155 = vsub.s32 5, %v154
    %v156 = vrot.slane %v116, %v155
    %158 = vbcast.lane.b32.xlu0 %v156, 256
    %v159 = vpop.permute.xlu0 %158
    %v160 = vlaneseq
    %v161 = vshrl.u32 %v160, 7
    %v162 = vsub.s32 6, %v161
    %v163 = vrot.slane %v116, %v162
    %165 = vbcast.lane.b32.xlu0 %v163, 256
    %v166 = vpop.permute.xlu0 %165
    %v167 = vlaneseq
    %v168 = vshrl.u32 %v167, 7
    %v169 = vsub.s32 7, %v168
    %v170 = vrot.slane %v116, %v169
    %172 = vbcast.lane.b32.xlu0 %v170, 256
    %v173 = vpop.permute.xlu0 %172
    %vm174 = vcmp.gt.f32.partialorder %v124, 0.0
    %vm175 = vcmp.gt.f32.partialorder %v131, 0.0
    %vm176 = vcmp.gt.f32.partialorder %v138, 0.0
    %vm177 = vcmp.gt.f32.partialorder %v145, 0.0
    %vm178 = vcmp.gt.f32.partialorder %v152, 0.0
    %vm179 = vcmp.gt.f32.partialorder %v159, 0.0
    %vm180 = vcmp.gt.f32.partialorder %v166, 0.0
    %vm181 = vcmp.gt.f32.partialorder %v173, 0.0
    %v183 = vcombine.high %v117, %v117
    %v185 = vunpack.c.l.s4 1966171168
    %v186 = vunpack.c.0.s8 %v185
    %v187 = vlaneseq
    %v188 = vshrl.u32 %v187, 7
    %v189 = vsub.s32 %v186, %v188
    %v190 = vrot.slane %v117, %v189
    %v192 = vunpack.c.l.s4 1966171168
    %v193 = vunpack.c.0.s8 %v192
    %v194 = vlaneseq
    %v195 = vshrl.u32 %v194, 7
    %v196 = vsub.s32 %v193, %v195
    %v197 = vrot.slane %v183, %v196
    %v198 = vcombine.high %v190, %v190
    %v199 = vcombine.high %v197, %v197
    %v201 = vunpack.c.l.s4 1966171168
    %v202 = vunpack.c.0.s8 %v201
    %v203 = vlaneseq
    %v204 = vshrl.u32 %v203, 7
    %v205 = vsub.s32 %v202, %v204
    %v206 = vrot.slane %v190, %v205
    %v208 = vunpack.c.l.s4 1966171168
    %v209 = vunpack.c.0.s8 %v208
    %v210 = vlaneseq
    %v211 = vshrl.u32 %v210, 7
    %v212 = vsub.s32 %v209, %v211
    %v213 = vrot.slane %v197, %v212
    %v215 = vunpack.c.l.s4 1966171168
    %v216 = vunpack.c.0.s8 %v215
    %v217 = vlaneseq
    %v218 = vshrl.u32 %v217, 7
    %v219 = vsub.s32 %v216, %v218
    %v220 = vrot.slane %v198, %v219
    %v222 = vunpack.c.l.s4 1966171168
    %v223 = vunpack.c.0.s8 %v222
    %v224 = vlaneseq
    %v225 = vshrl.u32 %v224, 7
    %v226 = vsub.s32 %v223, %v225
    %v227 = vrot.slane %v199, %v226
    %v228 = vcombine.high %v206, %v206
    %v229 = vcombine.high %v213, %v213
    %v230 = vcombine.high %v220, %v220
    %v231 = vcombine.high %v227, %v227
    %v232 = vsel %vm174, 1, 0
    %v233 = vsel %vm175, 1, 0
    %v234 = vsel %vm176, 1, 0
    %v235 = vsel %vm177, 1, 0
    %v236 = vsel %vm178, 1, 0
    %v237 = vsel %vm179, 1, 0
    %v238 = vsel %vm180, 1, 0
    %v239 = vsel %vm181, 1, 0
    %vm240 = vcmp.eq.s32.totalorder %v232, 1
    %vm241 = vcmp.eq.s32.totalorder %v233, 1
    %vm242 = vcmp.eq.s32.totalorder %v234, 1
    %vm243 = vcmp.eq.s32.totalorder %v235, 1
    %vm244 = vcmp.eq.s32.totalorder %v236, 1
    %vm245 = vcmp.eq.s32.totalorder %v237, 1
    %vm246 = vcmp.eq.s32.totalorder %v238, 1
    %vm247 = vcmp.eq.s32.totalorder %v239, 1
    %v248 = vlaneseq
    %v249 = vshrl.u32 %v248, 7
    %v250 = vsub.s32 0, %v249
    %v251 = vrot.slane %v206, %v250
    %v252 = vlaneseq
    %v253 = vshrl.u32 %v252, 7
    %v254 = vsub.s32 0, %v253
    %v255 = vrot.slane %v220, %v254
    %v256 = vlaneseq
    %v257 = vshrl.u32 %v256, 7
    %v258 = vsub.s32 0, %v257
    %v259 = vrot.slane %v228, %v258
    %v260 = vlaneseq
    %v261 = vshrl.u32 %v260, 7
    %v262 = vsub.s32 0, %v261
    %v263 = vrot.slane %v230, %v262
    %v264 = vlaneseq
    %v265 = vshrl.u32 %v264, 7
    %v266 = vsub.s32 0, %v265
    %v267 = vrot.slane %v213, %v266
    %v268 = vlaneseq
    %v269 = vshrl.u32 %v268, 7
    %v270 = vsub.s32 0, %v269
    %v271 = vrot.slane %v227, %v270
    %v272 = vlaneseq
    %v273 = vshrl.u32 %v272, 7
    %v274 = vsub.s32 0, %v273
    %v275 = vrot.slane %v229, %v274
    %v276 = vlaneseq
    %v277 = vshrl.u32 %v276, 7
    %v278 = vsub.s32 0, %v277
    %v279 = vrot.slane %v231, %v278
    %v288 = vsel %vm240, %v251, -1e+30
    %v289 = vsel %vm241, %v255, -1e+30
    %v290 = vsel %vm242, %v259, -1e+30
    %v291 = vsel %vm243, %v263, -1e+30
    %v292 = vsel %vm244, %v267, -1e+30
    %v293 = vsel %vm245, %v271, -1e+30
    %v294 = vsel %vm246, %v275, -1e+30
    %v295 = vsel %vm247, %v279, -1e+30
    %v296 = vsel %vm40, %v288, -inf
    %v297 = vsel %vm40, %v289, -inf
    %v298 = vsel %vm40, %v290, -inf
    %v299 = vsel %vm40, %v291, -inf
    %v300 = vsel %vm40, %v292, -inf
    %v301 = vmax.f32 %v296, %v300
    %v302 = vsel %vm40, %v293, -inf
    %v303 = vmax.f32 %v297, %v302
    %v304 = vsel %vm40, %v294, -inf
    %v305 = vmax.f32 %v298, %v304
    %v306 = vsel %vm40, %v295, -inf
    %v307 = vmax.f32 %v299, %v306
    %v308 = vmax.f32 %v301, %v303
    %v309 = vmax.f32 %v305, %v307
    %v310 = vmax.f32 %v308, %v309
    %v311 = vmax.f32 %v310, -1e+30
    %vm312 = vcmp.gt.f32.partialorder %v32, 0.0
    %v313 = vsel %vm312, 1, 0
    %314 = vset.pattern.permute.xlu0 0
    %315 = vperm.xlu0 %314, %v313
    %v316 = vpop.permute.xlu0 %315
    %vm317 = vcmp.eq.s32.totalorder %v316, 1
    %v318 = vsel %vm317, %v311, 0.0
    %v319 = vld [vmem:[%s5] sm:$0xff]
    %v320 = vld [vmem:[%s5 + $0x8] sm:$0xff]
    %v321 = vld [vmem:[%s5 + $0x10] sm:$0xff]
    %v322 = vld [vmem:[%s5 + $0x18] sm:$0xff]
    %v323 = vld [vmem:[%s5 + $0x20] sm:$0x1]
    %325 = vrot.lane.b32.xlu0 %v318, 16
    %v326 = vpop.permute.xlu0 %325
    %v328 = vsel %vm40, %v31, %v326
    %v329 = vlaneseq
    %v330 = vshrl.u32 %v329, 7
    %v331 = vsub.s32 0, %v330
    %v332 = vrot.slane %v323, %v331
    %vm333 = vcmask 261120
    %v335 = vsel %vm333, %v328, 0
    %337 = vmatprep.subr.mxu0 0.0
    %338 = vmatpush1.msra.mxu0 %v319
    %339 = vmatprep.subr.mxu0 0.0
    %340 = vmatpush1.msra.mxu0 %v320
    %341 = vmatprep.subr.mxu0 0.0
    %342 = vmatpush1.msra.mxu0 %v321
    %343 = vmatprep.subr.mxu0 0.0
    %344 = vmatpush1.msra.mxu0 %v322
    %345 = vmatprep.subr.mxu0 0.0
    %346 = vmatpush1.msra.mxu0 0.0
    %347 = vmatprep.subr.mxu0 0.0
    %348 = vmatpush1.msra.mxu0 0.0
    %349 = vmatprep.subr.mxu0 0.0
    %350 = vmatpush1.msra.mxu0 0.0
    %351 = vmatprep.subr.mxu0 0.0
    %352 = vmatpush1.msra.mxu0 0.0
    %353 = vmatprep.subr.mxu0 0.0
    %354 = vmatpush1.msra.mxu0 0.0
    %355 = vmatprep.subr.mxu0 0.0
    %356 = vmatpush1.msra.mxu0 0.0
    %357 = vmatprep.subr.mxu0 0.0
    %358 = vmatpush1.msra.mxu0 0.0
    %359 = vmatprep.subr.mxu0 0.0
    %360 = vmatpush1.msra.mxu0 0.0
    %361 = vmatprep.subr.mxu0 0.0
    %362 = vmatpush1.msra.mxu0 0.0
    %363 = vmatprep.subr.mxu0 0.0
    %364 = vmatpush1.msra.mxu0 0.0
    %365 = vmatprep.subr.mxu0 0.0
    %366 = vmatpush1.msra.mxu0 0.0
    %367 = vmatprep.subr.mxu0 0.0
    %368 = vmatpush1.msra.mxu0 0.0
    %369 = vmatprep.subr.mxu0 0.0
    %370 = vmatpush1.msra.mxu0 0.0
    %371 = vmatprep.subr.mxu0 0.0
    %372 = vmatpush1.msra.mxu0 0.0
    %373 = vmatprep.subr.mxu0 0.0
    %374 = vmatpush1.msra.mxu0 0.0
    %375 = vmatprep.subr.mxu0 0.0
    %376 = vmatpush1.msra.mxu0 0.0
    %377 = vmatprep.subr.mxu0 0.0
    %378 = vmatpush1.msra.mxu0 0.0
    %379 = vmatprep.subr.mxu0 0.0
    %380 = vmatpush1.msra.mxu0 0.0
    %381 = vmatprep.subr.mxu0 0.0
    %382 = vmatpush1.msra.mxu0 0.0
    %383 = vmatprep.subr.mxu0 0.0
    %384 = vmatpush1.msra.mxu0 0.0
    %385 = vmatprep.subr.mxu0 0.0
    %386 = vmatpush1.msra.mxu0 0.0
    %387 = vmatprep.subr.mxu0 0.0
    %388 = vmatpush1.msra.mxu0 0.0
    %389 = vmatprep.subr.mxu0 0.0
    %390 = vmatpush1.msra.mxu0 0.0
    %391 = vmatprep.subr.mxu0 0.0
    %392 = vmatpush1.msra.mxu0 0.0
    %393 = vmatprep.subr.mxu0 0.0
    %394 = vmatpush1.msra.mxu0 0.0
    %395 = vmatprep.subr.mxu0 0.0
    %396 = vmatpush1.msra.mxu0 0.0
    %397 = vmatprep.subr.mxu0 0.0
    %398 = vmatpush1.msra.mxu0 0.0
    %399 = vmatprep.subr.mxu0 0.0
    %400 = vmatpush1.msra.mxu0 0.0
    %401 = vmatprep.mubr.f32.mxu0 0.0
    %402 = vmatmul.mubr.f32.gmra.mrb[0].mxu0 %v335
    %v403 = vpop.f32.mrb[0].mxu0
    %v404 = vadd.f32 %v332, %v403
    %v405 = vpop.f32.mrb[0].mxu0
    %406 = vdwg.mxu0
    %v407 = vmax.f32 %v404, 0.0
    %v408 = vld [vmem:[%s5 + $0x28] sm:$0xff]
    %v409 = vld [vmem:[%s5 + $0x30] sm:$0xff]
    %v410 = vld [vmem:[%s5 + $0x38] sm:$0xff]
    %v411 = vld [vmem:[%s5 + $0x40] sm:$0xff]
    %v412 = vld [vmem:[%s5 + $0x48] sm:$0x1]
    %v413 = vlaneseq
    %v414 = vshrl.u32 %v413, 7
    %v415 = vsub.s32 0, %v414
    %v416 = vrot.slane %v412, %v415
    %v418 = vsel %vm333, %v407, 0
    %420 = vmatprep.subr.mxu0 0.0
    %421 = vmatpush1.msra.mxu0 %v408
    %422 = vmatprep.subr.mxu0 0.0
    %423 = vmatpush1.msra.mxu0 %v409
    %424 = vmatprep.subr.mxu0 0.0
    %425 = vmatpush1.msra.mxu0 %v410
    %426 = vmatprep.subr.mxu0 0.0
    %427 = vmatpush1.msra.mxu0 %v411
    %428 = vmatprep.subr.mxu0 0.0
    %429 = vmatpush1.msra.mxu0 0.0
    %430 = vmatprep.subr.mxu0 0.0
    %431 = vmatpush1.msra.mxu0 0.0
    %432 = vmatprep.subr.mxu0 0.0
    %433 = vmatpush1.msra.mxu0 0.0
    %434 = vmatprep.subr.mxu0 0.0
    %435 = vmatpush1.msra.mxu0 0.0
    %436 = vmatprep.subr.mxu0 0.0
    %437 = vmatpush1.msra.mxu0 0.0
    %438 = vmatprep.subr.mxu0 0.0
    %439 = vmatpush1.msra.mxu0 0.0
    %440 = vmatprep.subr.mxu0 0.0
    %441 = vmatpush1.msra.mxu0 0.0
    %442 = vmatprep.subr.mxu0 0.0
    %443 = vmatpush1.msra.mxu0 0.0
    %444 = vmatprep.subr.mxu0 0.0
    %445 = vmatpush1.msra.mxu0 0.0
    %446 = vmatprep.subr.mxu0 0.0
    %447 = vmatpush1.msra.mxu0 0.0
    %448 = vmatprep.subr.mxu0 0.0
    %449 = vmatpush1.msra.mxu0 0.0
    %450 = vmatprep.subr.mxu0 0.0
    %451 = vmatpush1.msra.mxu0 0.0
    %452 = vmatprep.subr.mxu0 0.0
    %453 = vmatpush1.msra.mxu0 0.0
    %454 = vmatprep.subr.mxu0 0.0
    %455 = vmatpush1.msra.mxu0 0.0
    %456 = vmatprep.subr.mxu0 0.0
    %457 = vmatpush1.msra.mxu0 0.0
    %458 = vmatprep.subr.mxu0 0.0
    %459 = vmatpush1.msra.mxu0 0.0
    %460 = vmatprep.subr.mxu0 0.0
    %461 = vmatpush1.msra.mxu0 0.0
    %462 = vmatprep.subr.mxu0 0.0
    %463 = vmatpush1.msra.mxu0 0.0
    %464 = vmatprep.subr.mxu0 0.0
    %465 = vmatpush1.msra.mxu0 0.0
    %466 = vmatprep.subr.mxu0 0.0
    %467 = vmatpush1.msra.mxu0 0.0
    %468 = vmatprep.subr.mxu0 0.0
    %469 = vmatpush1.msra.mxu0 0.0
    %470 = vmatprep.subr.mxu0 0.0
    %471 = vmatpush1.msra.mxu0 0.0
    %472 = vmatprep.subr.mxu0 0.0
    %473 = vmatpush1.msra.mxu0 0.0
    %474 = vmatprep.subr.mxu0 0.0
    %475 = vmatpush1.msra.mxu0 0.0
    %476 = vmatprep.subr.mxu0 0.0
    %477 = vmatpush1.msra.mxu0 0.0
    %478 = vmatprep.subr.mxu0 0.0
    %479 = vmatpush1.msra.mxu0 0.0
    %480 = vmatprep.subr.mxu0 0.0
    %481 = vmatpush1.msra.mxu0 0.0
    %482 = vmatprep.subr.mxu0 0.0
    %483 = vmatpush1.msra.mxu0 0.0
    %484 = vmatprep.mubr.f32.mxu0 0.0
    %485 = vmatmul.mubr.f32.gmra.mrb[0].mxu0 %v418
    %v486 = vpop.f32.mrb[0].mxu0
    %v487 = vadd.f32 %v416, %v486
    %v488 = vpop.f32.mrb[0].mxu0
    %489 = vdwg.mxu0
    %v490 = vmax.f32 %v487, 0.0
    %491 = vst.msk [vmem:[#allocation3] sm:$0xff] %vm333, %v490
    %v492 = vld [vmem:[%s2] sm:$0xff]
    %v493 = vld [vmem:[#allocation3] sm:$0xff]
    %v494 = vlaneseq
    %v495 = vshrl.u32 %v494, 7
    %v496 = vsub.s32 0, %v495
    %v497 = vrot.slane %v492, %v496
    %499 = vbcast.lane.b32.xlu0 %v497, 256
    %v500 = vpop.permute.xlu0 %499
    %v501 = vlaneseq
    %v502 = vshrl.u32 %v501, 7
    %v503 = vsub.s32 1, %v502
    %v504 = vrot.slane %v492, %v503
    %506 = vbcast.lane.b32.xlu0 %v504, 256
    %v507 = vpop.permute.xlu0 %506
    %v508 = vlaneseq
    %v509 = vshrl.u32 %v508, 7
    %v510 = vsub.s32 2, %v509
    %v511 = vrot.slane %v492, %v510
    %513 = vbcast.lane.b32.xlu0 %v511, 256
    %v514 = vpop.permute.xlu0 %513
    %v515 = vlaneseq
    %v516 = vshrl.u32 %v515, 7
    %v517 = vsub.s32 3, %v516
    %v518 = vrot.slane %v492, %v517
    %520 = vbcast.lane.b32.xlu0 %v518, 256
    %v521 = vpop.permute.xlu0 %520
    %v522 = vlaneseq
    %v523 = vshrl.u32 %v522, 7
    %v524 = vsub.s32 4, %v523
    %v525 = vrot.slane %v492, %v524
    %527 = vbcast.lane.b32.xlu0 %v525, 256
    %v528 = vpop.permute.xlu0 %527
    %v529 = vlaneseq
    %v530 = vshrl.u32 %v529, 7
    %v531 = vsub.s32 5, %v530
    %v532 = vrot.slane %v492, %v531
    %534 = vbcast.lane.b32.xlu0 %v532, 256
    %v535 = vpop.permute.xlu0 %534
    %v536 = vlaneseq
    %v537 = vshrl.u32 %v536, 7
    %v538 = vsub.s32 6, %v537
    %v539 = vrot.slane %v492, %v538
    %541 = vbcast.lane.b32.xlu0 %v539, 256
    %v542 = vpop.permute.xlu0 %541
    %v543 = vlaneseq
    %v544 = vshrl.u32 %v543, 7
    %v545 = vsub.s32 7, %v544
    %v546 = vrot.slane %v492, %v545
    %548 = vbcast.lane.b32.xlu0 %v546, 256
    %v549 = vpop.permute.xlu0 %548
    %vm550 = vcmp.gt.f32.partialorder %v500, 0.0
    %vm551 = vcmp.gt.f32.partialorder %v507, 0.0
    %vm552 = vcmp.gt.f32.partialorder %v514, 0.0
    %vm553 = vcmp.gt.f32.partialorder %v521, 0.0
    %vm554 = vcmp.gt.f32.partialorder %v528, 0.0
    %vm555 = vcmp.gt.f32.partialorder %v535, 0.0
    %vm556 = vcmp.gt.f32.partialorder %v542, 0.0
    %vm557 = vcmp.gt.f32.partialorder %v549, 0.0
    %v559 = vcombine.high %v493, %v493
    %v561 = vunpack.c.l.s4 1966171168
    %v562 = vunpack.c.0.s8 %v561
    %v563 = vlaneseq
    %v564 = vshrl.u32 %v563, 7
    %v565 = vsub.s32 %v562, %v564
    %v566 = vrot.slane %v493, %v565
    %v568 = vunpack.c.l.s4 1966171168
    %v569 = vunpack.c.0.s8 %v568
    %v570 = vlaneseq
    %v571 = vshrl.u32 %v570, 7
    %v572 = vsub.s32 %v569, %v571
    %v573 = vrot.slane %v559, %v572
    %v574 = vcombine.high %v566, %v566
    %v575 = vcombine.high %v573, %v573
    %v577 = vunpack.c.l.s4 1966171168
    %v578 = vunpack.c.0.s8 %v577
    %v579 = vlaneseq
    %v580 = vshrl.u32 %v579, 7
    %v581 = vsub.s32 %v578, %v580
    %v582 = vrot.slane %v566, %v581
    %v584 = vunpack.c.l.s4 1966171168
    %v585 = vunpack.c.0.s8 %v584
    %v586 = vlaneseq
    %v587 = vshrl.u32 %v586, 7
    %v588 = vsub.s32 %v585, %v587
    %v589 = vrot.slane %v573, %v588
    %v591 = vunpack.c.l.s4 1966171168
    %v592 = vunpack.c.0.s8 %v591
    %v593 = vlaneseq
    %v594 = vshrl.u32 %v593, 7
    %v595 = vsub.s32 %v592, %v594
    %v596 = vrot.slane %v574, %v595
    %v598 = vunpack.c.l.s4 1966171168
    %v599 = vunpack.c.0.s8 %v598
    %v600 = vlaneseq
    %v601 = vshrl.u32 %v600, 7
    %v602 = vsub.s32 %v599, %v601
    %v603 = vrot.slane %v575, %v602
    %v604 = vcombine.high %v582, %v582
    %v605 = vcombine.high %v589, %v589
    %v606 = vcombine.high %v596, %v596
    %v607 = vcombine.high %v603, %v603
    %v608 = vsel %vm550, 1, 0
    %v609 = vsel %vm551, 1, 0
    %v610 = vsel %vm552, 1, 0
    %v611 = vsel %vm553, 1, 0
    %v612 = vsel %vm554, 1, 0
    %v613 = vsel %vm555, 1, 0
    %v614 = vsel %vm556, 1, 0
    %v615 = vsel %vm557, 1, 0
    %vm616 = vcmp.eq.s32.totalorder %v608, 1
    %vm617 = vcmp.eq.s32.totalorder %v609, 1
    %vm618 = vcmp.eq.s32.totalorder %v610, 1
    %vm619 = vcmp.eq.s32.totalorder %v611, 1
    %vm620 = vcmp.eq.s32.totalorder %v612, 1
    %vm621 = vcmp.eq.s32.totalorder %v613, 1
    %vm622 = vcmp.eq.s32.totalorder %v614, 1
    %vm623 = vcmp.eq.s32.totalorder %v615, 1
    %v624 = vlaneseq
    %v625 = vshrl.u32 %v624, 7
    %v626 = vsub.s32 0, %v625
    %v627 = vrot.slane %v582, %v626
    %v628 = vlaneseq
    %v629 = vshrl.u32 %v628, 7
    %v630 = vsub.s32 0, %v629
    %v631 = vrot.slane %v596, %v630
    %v632 = vlaneseq
    %v633 = vshrl.u32 %v632, 7
    %v634 = vsub.s32 0, %v633
    %v635 = vrot.slane %v604, %v634
    %v636 = vlaneseq
    %v637 = vshrl.u32 %v636, 7
    %v638 = vsub.s32 0, %v637
    %v639 = vrot.slane %v606, %v638
    %v640 = vlaneseq
    %v641 = vshrl.u32 %v640, 7
    %v642 = vsub.s32 0, %v641
    %v643 = vrot.slane %v589, %v642
    %v644 = vlaneseq
    %v645 = vshrl.u32 %v644, 7
    %v646 = vsub.s32 0, %v645
    %v647 = vrot.slane %v603, %v646
    %v648 = vlaneseq
    %v649 = vshrl.u32 %v648, 7
    %v650 = vsub.s32 0, %v649
    %v651 = vrot.slane %v605, %v650
    %v652 = vlaneseq
    %v653 = vshrl.u32 %v652, 7
    %v654 = vsub.s32 0, %v653
    %v655 = vrot.slane %v607, %v654
    %v664 = vsel %vm616, %v627, -1e+30
    %v665 = vsel %vm617, %v631, -1e+30
    %v666 = vsel %vm618, %v635, -1e+30
    %v667 = vsel %vm619, %v639, -1e+30
    %v668 = vsel %vm620, %v643, -1e+30
    %v669 = vsel %vm621, %v647, -1e+30
    %v670 = vsel %vm622, %v651, -1e+30
    %v671 = vsel %vm623, %v655, -1e+30
    %v672 = vsel %vm333, %v664, -inf
    %v673 = vsel %vm333, %v665, -inf
    %v674 = vsel %vm333, %v666, -inf
    %v675 = vsel %vm333, %v667, -inf
    %v676 = vsel %vm333, %v668, -inf
    %v677 = vmax.f32 %v672, %v676
    %v678 = vsel %vm333, %v669, -inf
    %v679 = vmax.f32 %v673, %v678
    %v680 = vsel %vm333, %v670, -inf
    %v681 = vmax.f32 %v674, %v680
    %v682 = vsel %vm333, %v671, -inf
    %v683 = vmax.f32 %v675, %v682
    %v684 = vmax.f32 %v677, %v679
    %v685 = vmax.f32 %v681, %v683
    %v686 = vmax.f32 %v684, %v685
    %v687 = vmax.f32 %v686, -1e+30
    %v688 = vsel %vm317, %v687, 0.0
    %v689 = vld [vmem:[%s5 + $0x50] sm:$0xff]
    %v690 = vld [vmem:[%s5 + $0x58] sm:$0xff]
    %v691 = vld [vmem:[%s5 + $0x60] sm:$0xff]
    %v692 = vld [vmem:[%s5 + $0x68] sm:$0xff]
    %v693 = vld [vmem:[%s5 + $0x70] sm:$0xff]
    %v694 = vld [vmem:[%s5 + $0x78] sm:$0xff]
    %v695 = vld [vmem:[%s5 + $0x80] sm:$0xff]
    %v696 = vld [vmem:[%s5 + $0x88] sm:$0xff]
    %v697 = vld [vmem:[%s5 + $0x90] sm:$0x1]
    %699 = vrot.lane.b32.xlu0 %v688, 32
    %v700 = vpop.permute.xlu0 %699
    %v702 = vsel %vm333, %v407, %v700
    %v703 = vlaneseq
    %v704 = vshrl.u32 %v703, 7
    %v705 = vsub.s32 0, %v704
    %v706 = vrot.slane %v697, %v705
    %vm707 = vcmask 523264
    %v709 = vsel %vm707, %v702, 0
    %711 = vmatprep.subr.mxu0 0.0
    %712 = vmatpush1.msra.mxu0 %v689
    %713 = vmatprep.subr.mxu0 0.0
    %714 = vmatpush1.msra.mxu0 %v690
    %715 = vmatprep.subr.mxu0 0.0
    %716 = vmatpush1.msra.mxu0 %v691
    %717 = vmatprep.subr.mxu0 0.0
    %718 = vmatpush1.msra.mxu0 %v692
    %719 = vmatprep.subr.mxu0 0.0
    %720 = vmatpush1.msra.mxu0 %v693
    %721 = vmatprep.subr.mxu0 0.0
    %722 = vmatpush1.msra.mxu0 %v694
    %723 = vmatprep.subr.mxu0 0.0
    %724 = vmatpush1.msra.mxu0 %v695
    %725 = vmatprep.subr.mxu0 0.0
    %726 = vmatpush1.msra.mxu0 %v696
    %727 = vmatprep.subr.mxu0 0.0
    %728 = vmatpush1.msra.mxu0 0.0
    %729 = vmatprep.subr.mxu0 0.0
    %730 = vmatpush1.msra.mxu0 0.0
    %731 = vmatprep.subr.mxu0 0.0
    %732 = vmatpush1.msra.mxu0 0.0
    %733 = vmatprep.subr.mxu0 0.0
    %734 = vmatpush1.msra.mxu0 0.0
    %735 = vmatprep.subr.mxu0 0.0
    %736 = vmatpush1.msra.mxu0 0.0
    %737 = vmatprep.subr.mxu0 0.0
    %738 = vmatpush1.msra.mxu0 0.0
    %739 = vmatprep.subr.mxu0 0.0
    %740 = vmatpush1.msra.mxu0 0.0
    %741 = vmatprep.subr.mxu0 0.0
    %742 = vmatpush1.msra.mxu0 0.0
    %743 = vmatprep.subr.mxu0 0.0
    %744 = vmatpush1.msra.mxu0 0.0
    %745 = vmatprep.subr.mxu0 0.0
    %746 = vmatpush1.msra.mxu0 0.0
    %747 = vmatprep.subr.mxu0 0.0
    %748 = vmatpush1.msra.mxu0 0.0
    %749 = vmatprep.subr.mxu0 0.0
    %750 = vmatpush1.msra.mxu0 0.0
    %751 = vmatprep.subr.mxu0 0.0
    %752 = vmatpush1.msra.mxu0 0.0
    %753 = vmatprep.subr.mxu0 0.0
    %754 = vmatpush1.msra.mxu0 0.0
    %755 = vmatprep.subr.mxu0 0.0
    %756 = vmatpush1.msra.mxu0 0.0
    %757 = vmatprep.subr.mxu0 0.0
    %758 = vmatpush1.msra.mxu0 0.0
    %759 = vmatprep.subr.mxu0 0.0
    %760 = vmatpush1.msra.mxu0 0.0
    %761 = vmatprep.subr.mxu0 0.0
    %762 = vmatpush1.msra.mxu0 0.0
    %763 = vmatprep.subr.mxu0 0.0
    %764 = vmatpush1.msra.mxu0 0.0
    %765 = vmatprep.subr.mxu0 0.0
    %766 = vmatpush1.msra.mxu0 0.0
    %767 = vmatprep.subr.mxu0 0.0
    %768 = vmatpush1.msra.mxu0 0.0
    %769 = vmatprep.subr.mxu0 0.0
    %770 = vmatpush1.msra.mxu0 0.0
    %771 = vmatprep.subr.mxu0 0.0
    %772 = vmatpush1.msra.mxu0 0.0
    %773 = vmatprep.subr.mxu0 0.0
    %774 = vmatpush1.msra.mxu0 0.0
    %775 = vmatprep.mubr.f32.mxu0 0.0
    %776 = vmatmul.mubr.f32.gmra.mrb[0].mxu0 %v709
    %v777 = vpop.f32.mrb[0].mxu0
    %v778 = vadd.f32 %v706, %v777
    %v779 = vpop.f32.mrb[0].mxu0
    %780 = vdwg.mxu0
    %v781 = vmax.f32 %v778, 0.0
    %782 = vset.pattern.permute.xlu0 2
    %783 = vperm.xlu0 %782, %v313
    %v784 = vpop.permute.xlu0 %783
    %vm785 = vcmp.eq.s32.totalorder %v784, 1
    %v786 = vsel %vm785, %v781, -1e+30
    %v787 = vsel %vm333, %v786, -inf
    %v788 = vrot.slane %v787, 4
    %v789 = vmax.f32 %v787, %v788
    %v790 = vrot.slane %v789, 2
    %v791 = vmax.f32 %v789, %v790
    %v792 = vrot.slane %v791, 1
    %v793 = vmax.f32 %v791, %v792
    %794 = vset.pattern.permute.xlu0 1
    %795 = vperm.xlu0 %794, %v313
    %v796 = vpop.permute.xlu0 %795
    %vm797 = vcmp.eq.s32.totalorder %v796, 1
    %v798 = vsel %vm797, %v781, -1e+30
    %v799 = vsel %vm333, %v798, -inf
    %v800 = vrot.slane %v799, 4
    %v801 = vmax.f32 %v799, %v800
    %v802 = vrot.slane %v801, 2
    %v803 = vmax.f32 %v801, %v802
    %v804 = vrot.slane %v803, 1
    %v805 = vmax.f32 %v803, %v804
    %806 = vst.msk [vmem:[#allocation3] sm:$0xff] %vm333, %v781
    %s807 = sld [smem:[#allocation4]]
    %s808 = scalar_lea.vmem [#allocation3], %s807
    %v809 = vld [vmem:[%s808] sm:$0x1]
    %811 = vrot.lane.b32.xlu0 %v805, 32
    %v812 = vpop.permute.xlu0 %811
    %815 = vrot.lane.b32.xlu0 %v809, 64
    %v816 = vpop.permute.xlu0 %815
    %v818 = vsel %vm333, %v793, %v812
    %v819 = vsel %vm707, %v818, %v816
    %v820 = vld [vmem:[%s6] sm:$0xff]
    %v821 = vld [vmem:[%s6 + $0x8] sm:$0xff]
    %v822 = vld [vmem:[%s6 + $0x10] sm:$0xff]
    %v823 = vld [vmem:[%s6 + $0x18] sm:$0xff]
    %v824 = vld [vmem:[%s6 + $0x20] sm:$0xff]
    %v825 = vld [vmem:[%s6 + $0x28] sm:$0xff]
    %v826 = vld [vmem:[%s6 + $0x30] sm:$0xff]
    %v827 = vld [vmem:[%s6 + $0x38] sm:$0xff]
    %v828 = vld [vmem:[%s6 + $0x40] sm:$0xff]
    %v829 = vld [vmem:[%s6 + $0x48] sm:$0xff]
    %v830 = vld [vmem:[%s6 + $0x50] sm:$0xff]
    %v831 = vld [vmem:[%s6 + $0x58] sm:$0xff]
    %v832 = vld [vmem:[%s6 + $0x60] sm:$0x1]
    %vm833 = vcmask 785408
    %v835 = vsel %vm833, %v819, 0
    %837 = vmatprep.subr.mxu0 0.0
    %838 = vmatpush1.msra.mxu0 %v820
    %839 = vmatprep.subr.mxu0 0.0
    %840 = vmatpush1.msra.mxu0 %v821
    %841 = vmatprep.subr.mxu0 0.0
    %842 = vmatpush1.msra.mxu0 %v822
    %843 = vmatprep.subr.mxu0 0.0
    %844 = vmatpush1.msra.mxu0 %v823
    %845 = vmatprep.subr.mxu0 0.0
    %846 = vmatpush1.msra.mxu0 %v824
    %847 = vmatprep.subr.mxu0 0.0
    %848 = vmatpush1.msra.mxu0 %v825
    %849 = vmatprep.subr.mxu0 0.0
    %850 = vmatpush1.msra.mxu0 %v826
    %851 = vmatprep.subr.mxu0 0.0
    %852 = vmatpush1.msra.mxu0 %v827
    %853 = vmatprep.subr.mxu0 0.0
    %854 = vmatpush1.msra.mxu0 %v828
    %855 = vmatprep.subr.mxu0 0.0
    %856 = vmatpush1.msra.mxu0 %v829
    %857 = vmatprep.subr.mxu0 0.0
    %858 = vmatpush1.msra.mxu0 %v830
    %859 = vmatprep.subr.mxu0 0.0
    %860 = vmatpush1.msra.mxu0 %v831
    %861 = vmatprep.subr.mxu0 0.0
    %862 = vmatpush1.msra.mxu0 0.0
    %863 = vmatprep.subr.mxu0 0.0
    %864 = vmatpush1.msra.mxu0 0.0
    %865 = vmatprep.subr.mxu0 0.0
    %866 = vmatpush1.msra.mxu0 0.0
    %867 = vmatprep.subr.mxu0 0.0
    %868 = vmatpush1.msra.mxu0 0.0
    %869 = vmatprep.subr.mxu0 0.0
    %870 = vmatpush1.msra.mxu0 0.0
    %871 = vmatprep.subr.mxu0 0.0
    %872 = vmatpush1.msra.mxu0 0.0
    %873 = vmatprep.subr.mxu0 0.0
    %874 = vmatpush1.msra.mxu0 0.0
    %875 = vmatprep.subr.mxu0 0.0
    %876 = vmatpush1.msra.mxu0 0.0
    %877 = vmatprep.subr.mxu0 0.0
    %878 = vmatpush1.msra.mxu0 0.0
    %879 = vmatprep.subr.mxu0 0.0
    %880 = vmatpush1.msra.mxu0 0.0
    %881 = vmatprep.subr.mxu0 0.0
    %882 = vmatpush1.msra.mxu0 0.0
    %883 = vmatprep.subr.mxu0 0.0
    %884 = vmatpush1.msra.mxu0 0.0
    %885 = vmatprep.subr.mxu0 0.0
    %886 = vmatpush1.msra.mxu0 0.0
    %887 = vmatprep.subr.mxu0 0.0
    %888 = vmatpush1.msra.mxu0 0.0
    %889 = vmatprep.subr.mxu0 0.0
    %890 = vmatpush1.msra.mxu0 0.0
    %891 = vmatprep.subr.mxu0 0.0
    %892 = vmatpush1.msra.mxu0 0.0
    %893 = vmatprep.subr.mxu0 0.0
    %894 = vmatpush1.msra.mxu0 0.0
    %895 = vmatprep.subr.mxu0 0.0
    %896 = vmatpush1.msra.mxu0 0.0
    %897 = vmatprep.subr.mxu0 0.0
    %898 = vmatpush1.msra.mxu0 0.0
    %899 = vmatprep.subr.mxu0 0.0
    %900 = vmatpush1.msra.mxu0 0.0
    %901 = vmatprep.mubr.f32.mxu0 0.0
    %902 = vmatmul.mubr.f32.gmra.mrb[0].mxu0 %v835
    %v903 = vpop.f32.mrb[0].mxu0
    %v904 = vadd.f32 %v832, %v903
    %v905 = vpop.f32.mrb[0].mxu0
    %906 = vdwg.mxu0
    %v907 = vmax.f32 %v904, 0.0
    %v908 = vld [vmem:[%s7] sm:$0xff]
    %v909 = vld [vmem:[%s7 + $0x8] sm:$0xff]
    %v910 = vld [vmem:[%s7 + $0x10] sm:$0xff]
    %v911 = vld [vmem:[%s7 + $0x18] sm:$0xff]
    %v912 = vld [vmem:[%s7 + $0x20] sm:$0xff]
    %v913 = vld [vmem:[%s7 + $0x28] sm:$0xff]
    %v914 = vld [vmem:[%s7 + $0x30] sm:$0xff]
    %v915 = vld [vmem:[%s7 + $0x38] sm:$0xff]
    %v916 = vld [vmem:[%s7 + $0x40] sm:$0x1]
    %v918 = vsel %vm707, %v907, 0
    %920 = vmatprep.subr.mxu0 0.0
    %921 = vmatpush1.msra.mxu0 %v908
    %922 = vmatprep.subr.mxu0 0.0
    %923 = vmatpush1.msra.mxu0 %v909
    %924 = vmatprep.subr.mxu0 0.0
    %925 = vmatpush1.msra.mxu0 %v910
    %926 = vmatprep.subr.mxu0 0.0
    %927 = vmatpush1.msra.mxu0 %v911
    %928 = vmatprep.subr.mxu0 0.0
    %929 = vmatpush1.msra.mxu0 %v912
    %930 = vmatprep.subr.mxu0 0.0
    %931 = vmatpush1.msra.mxu0 %v913
    %932 = vmatprep.subr.mxu0 0.0
    %933 = vmatpush1.msra.mxu0 %v914
    %934 = vmatprep.subr.mxu0 0.0
    %935 = vmatpush1.msra.mxu0 %v915
    %936 = vmatprep.subr.mxu0 0.0
    %937 = vmatpush1.msra.mxu0 0.0
    %938 = vmatprep.subr.mxu0 0.0
    %939 = vmatpush1.msra.mxu0 0.0
    %940 = vmatprep.subr.mxu0 0.0
    %941 = vmatpush1.msra.mxu0 0.0
    %942 = vmatprep.subr.mxu0 0.0
    %943 = vmatpush1.msra.mxu0 0.0
    %944 = vmatprep.subr.mxu0 0.0
    %945 = vmatpush1.msra.mxu0 0.0
    %946 = vmatprep.subr.mxu0 0.0
    %947 = vmatpush1.msra.mxu0 0.0
    %948 = vmatprep.subr.mxu0 0.0
    %949 = vmatpush1.msra.mxu0 0.0
    %950 = vmatprep.subr.mxu0 0.0
    %951 = vmatpush1.msra.mxu0 0.0
    %952 = vmatprep.subr.mxu0 0.0
    %953 = vmatpush1.msra.mxu0 0.0
    %954 = vmatprep.subr.mxu0 0.0
    %955 = vmatpush1.msra.mxu0 0.0
    %956 = vmatprep.subr.mxu0 0.0
    %957 = vmatpush1.msra.mxu0 0.0
    %958 = vmatprep.subr.mxu0 0.0
    %959 = vmatpush1.msra.mxu0 0.0
    %960 = vmatprep.subr.mxu0 0.0
    %961 = vmatpush1.msra.mxu0 0.0
    %962 = vmatprep.subr.mxu0 0.0
    %963 = vmatpush1.msra.mxu0 0.0
    %964 = vmatprep.subr.mxu0 0.0
    %965 = vmatpush1.msra.mxu0 0.0
    %966 = vmatprep.subr.mxu0 0.0
    %967 = vmatpush1.msra.mxu0 0.0
    %968 = vmatprep.subr.mxu0 0.0
    %969 = vmatpush1.msra.mxu0 0.0
    %970 = vmatprep.subr.mxu0 0.0
    %971 = vmatpush1.msra.mxu0 0.0
    %972 = vmatprep.subr.mxu0 0.0
    %973 = vmatpush1.msra.mxu0 0.0
    %974 = vmatprep.subr.mxu0 0.0
    %975 = vmatpush1.msra.mxu0 0.0
    %976 = vmatprep.subr.mxu0 0.0
    %977 = vmatpush1.msra.mxu0 0.0
    %978 = vmatprep.subr.mxu0 0.0
    %979 = vmatpush1.msra.mxu0 0.0
    %980 = vmatprep.subr.mxu0 0.0
    %981 = vmatpush1.msra.mxu0 0.0
    %982 = vmatprep.subr.mxu0 0.0
    %983 = vmatpush1.msra.mxu0 0.0
    %984 = vmatprep.mubr.f32.mxu0 0.0
    %985 = vmatmul.mubr.f32.gmra.mrb[0].mxu0 %v918
    %v986 = vpop.f32.mrb[0].mxu0
    %v987 = vadd.f32 %v916, %v986
    %v988 = vpop.f32.mrb[0].mxu0
    %989 = vdwg.mxu0
    %vm990 = vcmask 0
    %991 = vst.msk [vmem:[#allocation5] sm:$0x1] %vm990, %v987
    // Predicated region
    $region34: #{tpu_custom_call.1} parent=1 // pred_check
      _
    $region35: #{tpu_custom_call.1} parent=1 // pred_check_branch
      %993 = sbr.rel (0) target = $region37
    $region36: #{tpu_custom_call.1} parent=1 // pred_region
      %s995 = ssub.s32 16, 16
      %996 = vsyncadd [#allocation6], %s995
      %s998 = sshll.u32 [#allocation5], 4
      %s999 = int_to_ptr.vmem [resolvable:$true] %s998
      %1001 = dma.vmem_to_hbm [thread:$0]  %s999, 16, %s8, [#allocation6]
    $region37: #{tpu_custom_call.1} parent=1 // pred_fallthru
      _
    // Predicated region
    $region38: #{tpu_custom_call.1} parent=1 // pred_check
      _
    $region39: #{tpu_custom_call.1} parent=1 // pred_check_branch
      %1003 = sbr.rel (0) target = $region41
    $region40: #{tpu_custom_call.1} parent=1 // pred_region
      %1004 = dma.done [#allocation6], 16
    $region41: #{tpu_custom_call.1} parent=1 // pred_fallthru
      _
    %1005 = vsyncpa [#allocation6], 1

</llo_original>
